<compile_context>
chip_gen: v7x
topology: tpu7x:2x2x1
jax: 0.10.0
libtpu: 0.0.40
codegen_flags: <defaults>
</compile_context>

<pallas_src>
import functools

import jax
import jax.numpy as jnp
from jax import lax
from jax.experimental import pallas as pl
from jax.experimental.pallas import tpu as pltpu


def _focal_loss_kernel(logits_ref, target_ref, out_ref, acc_ref, *, gamma,
                       batch_size, block_rows, alpha_ref=None):
    i = pl.program_id(0)

    @pl.when(i == 0)
    def _init():
        acc_ref[...] = jnp.zeros_like(acc_ref)

    logits = logits_ref[...].astype(jnp.float32)          # (TB, C) f32 in VMEM
    tgt = target_ref[...]                                  # (TB, 1) int32

    # Valid-row mask for the (possibly padded) final tile.
    row = lax.broadcasted_iota(jnp.int32, (block_rows, 1), 0) + i * block_rows
    valid = row < batch_size                               # (TB, 1) bool

    # Log-sum-exp over the class (lane) axis — no (TB, C) probs materialized.
    m = jnp.max(logits, axis=-1, keepdims=True)            # (TB, 1)
    denom = jnp.sum(jnp.exp(logits - m), axis=-1, keepdims=True)  # (TB, 1)

    # Gather logit at the target class via a one-hot mask (no dynamic gather).
    col = lax.broadcasted_iota(jnp.int32, logits.shape, 1)  # (TB, C)
    onehot = col == tgt                                     # (TB, C) bool
    x_t = jnp.sum(jnp.where(onehot, logits, 0.0), axis=-1, keepdims=True)

    logp = (x_t - m) - jnp.log(denom)                       # (TB, 1) exact log p
    p = jnp.exp(logp)                                       # (TB, 1)

    one_minus_p = 1.0 - p
    g = float(gamma)
    if g == 2.0:
        focal_w = one_minus_p * one_minus_p                 # default: 1 VPU mul
    elif g == 1.0:
        focal_w = one_minus_p
    elif g == 0.0:
        focal_w = jnp.ones_like(one_minus_p)
    else:
        focal_w = one_minus_p ** g
    loss = -focal_w * logp                                  # (TB, 1)

    if alpha_ref is not None:
        loss = alpha_ref[...].astype(jnp.float32) * loss    # per-row alpha[target]

    acc_ref[...] += jnp.sum(jnp.where(valid, loss, 0.0)).reshape(1, 1)

    @pl.when(i == pl.num_programs(0) - 1)
    def _finalize():
        out_ref[...] = acc_ref[...] * (1.0 / float(batch_size))


def _kernel_no_alpha(logits_ref, target_ref, out_ref, acc_ref, *, gamma,
                     batch_size, block_rows):
    _focal_loss_kernel(logits_ref, target_ref, out_ref, acc_ref, gamma=gamma,
                       batch_size=batch_size, block_rows=block_rows)


def _kernel_with_alpha(logits_ref, target_ref, alpha_ref, out_ref, acc_ref, *,
                       gamma, batch_size, block_rows):
    _focal_loss_kernel(logits_ref, target_ref, out_ref, acc_ref, gamma=gamma,
                       batch_size=batch_size, block_rows=block_rows,
                       alpha_ref=alpha_ref)


def _choose_block_rows(B, C, itemsize):
    """Biggest batch tile whose double-buffered logits slab stays VMEM-safe
    on every generation (v7x has half the VMEM of v6e)."""
    per_buffer_budget = 4 * 1024 * 1024        # 4 MiB per logits buffer
    tb = per_buffer_budget // max(1, C * itemsize)
    tb = max(8, (tb // 8) * 8)                 # multiple of 8 sublanes
    if tb >= B:
        return B                               # single tile == full array dim
    return tb


def focal_loss(logits, target, gamma=2.0, alpha=None, block_rows=None):
    """Pallas TPU implementation of FocalLoss.forward.

    logits: (B, C) float array (any float dtype; DMA'd natively, upcast in VMEM)
    target: (B,)   int array of class indices
    alpha : optional (C,) float array of per-class weights
    returns: scalar (float32) mean focal loss
    """
    B, C = logits.shape
    target2d = target.astype(jnp.int32).reshape(B, 1)

    if block_rows is None:
        block_rows = _choose_block_rows(B, C, jnp.dtype(logits.dtype).itemsize)
    tb = int(block_rows)
    grid = (pl.cdiv(B, tb),)

    logits_spec = pl.BlockSpec((tb, C), lambda i: (i, 0))
    rowvec_spec = pl.BlockSpec((tb, 1), lambda i: (i, 0))
    out_spec = pl.BlockSpec((1, 1), lambda i: (0, 0))       # resident accumulator

    cparams = pltpu.CompilerParams(
        dimension_semantics=("arbitrary",),                 # reduction axis
        vmem_limit_bytes=32 * 1024 * 1024,
    )

    if alpha is None:
        kernel = functools.partial(_kernel_no_alpha, gamma=float(gamma),
                                   batch_size=B, block_rows=tb)
        out = pl.pallas_call(
            kernel,
            out_shape=jax.ShapeDtypeStruct((1, 1), jnp.float32),
            grid=grid,
            in_specs=[logits_spec, rowvec_spec],
            out_specs=out_spec,
            scratch_shapes=[pltpu.VMEM((1, 1), jnp.float32)],
            compiler_params=cparams,
        )(logits, target2d)
    else:
        # Tiny per-row gather done once in the wrapper; kernel sees (TB, 1).
        alpha_t = jnp.take(jnp.asarray(alpha, jnp.float32), target2d[:, 0],
                           axis=0).reshape(B, 1)
        kernel = functools.partial(_kernel_with_alpha, gamma=float(gamma),
                                   batch_size=B, block_rows=tb)
        out = pl.pallas_call(
            kernel,
            out_shape=jax.ShapeDtypeStruct((1, 1), jnp.float32),
            grid=grid,
            in_specs=[logits_spec, rowvec_spec, rowvec_spec],
            out_specs=out_spec,
            scratch_shapes=[pltpu.VMEM((1, 1), jnp.float32)],
            compiler_params=cparams,
        )(logits, target2d, alpha_t)

    return out[0, 0]


def _reference(logits, target, gamma=2.0, alpha=None):
    probs = jax.nn.softmax(logits.astype(jnp.float32), axis=1)
    p = probs[jnp.arange(logits.shape[0]), target]
    loss = -((1.0 - p) ** gamma) * jnp.log(p + 1e-10)
    if alpha is not None:
        loss = jnp.asarray(alpha, jnp.float32)[target] * loss
    return jnp.mean(loss)


if __name__ == "__main__":
    key = jax.random.PRNGKey(0)
    k1, k2, k3, k4, k5 = jax.random.split(key, 5)

    # Small shapes consistent with a classification loss.
    B, C = 8, 16
    logits = jax.random.normal(k1, (B, C), dtype=jnp.float32)
    target = jax.random.randint(k2, (B,), 0, C, dtype=jnp.int32)
    alpha = jax.random.uniform(k3, (C,), dtype=jnp.float32)

    # Default module config: gamma=2.0, alpha=None.
    out = jax.block_until_ready(focal_loss(logits, target, gamma=2.0, alpha=None))
    ref = _reference(logits, target, gamma=2.0, alpha=None)
    assert jnp.allclose(out, ref, rtol=1e-5, atol=1e-6), (out, ref)

    # alpha-weighted path.
    out_a = jax.block_until_ready(focal_loss(logits, target, gamma=2.0, alpha=alpha))
    ref_a = _reference(logits, target, gamma=2.0, alpha=alpha)
    assert jnp.allclose(out_a, ref_a, rtol=1e-5, atol=1e-6), (out_a, ref_a)

    # Multi-tile path with a padded final tile (exercises accumulator + row mask).
    B2 = 20
    logits2 = jax.random.normal(k4, (B2, C), dtype=jnp.float32)
    target2 = jax.random.randint(k5, (B2,), 0, C, dtype=jnp.int32)
    out_t = jax.block_until_ready(focal_loss(logits2, target2, gamma=2.0,
                                             block_rows=8))
    ref_t = _reference(logits2, target2, gamma=2.0)
    assert jnp.allclose(out_t, ref_t, rtol=1e-5, atol=1e-6), (out_t, ref_t)

    # Native bf16 logits DMA'd as-is, upcast inside the kernel.
    out_bf = jax.block_until_ready(
        focal_loss(logits.astype(jnp.bfloat16), target, gamma=2.0))
    ref_bf = _reference(logits.astype(jnp.bfloat16), target, gamma=2.0)
    assert jnp.allclose(out_bf, ref_bf, rtol=1e-3, atol=1e-3), (out_bf, ref_bf)

    print("KERNEL_OK")
</pallas_src>

<mosaic_0001>
module attributes {stable_mosaic.version = 11 : i64} {
  func.func @_kernel_no_alpha(%arg0: i32, %arg1: memref<8x16xf32, #tpu.memory_space<vmem>>, %arg2: memref<8x1xi32, #tpu.memory_space<vmem>>, %arg3: memref<1x1xf32, #tpu.memory_space<vmem>>, %arg4: memref<1x1xf32, #tpu.memory_space<vmem>>) attributes {dimension_semantics = [#tpu.dimension_semantics<arbitrary>], iteration_bounds = array<i64: 1>, scalar_prefetch = 0 : i64, scratch_operands = 1 : i64, tpu.core_type = #tpu.core_type<tc>, window_params = [{transform_indices = @transform_0, window_bounds = array<i64: 8, 16>}, {transform_indices = @transform_1, window_bounds = array<i64: 8, 1>}, {pipeline_mode = #tpu.pipeline_mode<synchronous>, transform_indices = @transform_2, window_bounds = array<i64: 1, 1>}]} {
    %c0_i32 = arith.constant 0 : i32
    %0 = arith.cmpi eq, %arg0, %c0_i32 : i32
    %1 = arith.extui %0 : i1 to i32
    %c0_i32_0 = arith.constant 0 : i32
    %2 = arith.cmpi ne, %1, %c0_i32_0 : i32
    scf.if %2 {
      %cst_18 = arith.constant 0.000000e+00 : f32
      %48 = vector.broadcast %cst_18 : f32 to vector<1x1xf32>
      %c0_19 = arith.constant 0 : index
      %c0_20 = arith.constant 0 : index
      %49 = vector.load %arg4[%c0_19, %c0_20] : memref<1x1xf32, #tpu.memory_space<vmem>>, vector<1x1xf32>
      tpu.vector_store %arg4[%c0_19, %c0_20], %48 {strides = array<i32>} : memref<1x1xf32, #tpu.memory_space<vmem>>, vector<1x1xf32>,
    } else {
    }
    %c0 = arith.constant 0 : index
    %c0_1 = arith.constant 0 : index
    %3 = vector.load %arg1[%c0, %c0_1] : memref<8x16xf32, #tpu.memory_space<vmem>>, vector<8x16xf32>
    %c0_2 = arith.constant 0 : index
    %c0_3 = arith.constant 0 : index
    %4 = vector.load %arg2[%c0_2, %c0_3] : memref<8x1xi32, #tpu.memory_space<vmem>>, vector<8x1xi32>
    %5 = tpu.iota {dimensions = array<i32: 0>} : vector<8x1xi32>
    %c8_i32 = arith.constant 8 : i32
    %6 = arith.muli %arg0, %c8_i32 : i32
    %7 = vector.broadcast %6 : i32 to vector<8x1xi32>
    %8 = arith.addi %5, %7 : vector<8x1xi32>
    %c8_i32_4 = arith.constant 8 : i32
    %9 = vector.broadcast %c8_i32_4 : i32 to vector<8x1xi32>
    %10 = arith.cmpi slt, %8, %9 : vector<8x1xi32>
    %cst = arith.constant dense<0xFF800000> : vector<8xf32>
    %11 = vector.multi_reduction <maximumf>, %3, %cst [1] : vector<8x16xf32> to vector<8xf32>
    %12 = vector.shape_cast %11 : vector<8xf32> to vector<8x1xf32>
    %13 = vector.broadcast %12 : vector<8x1xf32> to vector<8x16xf32>
    %14 = arith.subf %3, %13 : vector<8x16xf32>
    %15 = math.exp %14 : vector<8x16xf32>
    %cst_5 = arith.constant dense<0.000000e+00> : vector<8xf32>
    %16 = vector.multi_reduction <add>, %15, %cst_5 [1] : vector<8x16xf32> to vector<8xf32>
    %17 = vector.shape_cast %16 : vector<8xf32> to vector<8x1xf32>
    %18 = tpu.iota {dimensions = array<i32: 1>} : vector<8x16xi32>
    %19 = vector.broadcast %4 : vector<8x1xi32> to vector<8x16xi32>
    %20 = arith.cmpi eq, %18, %19 : vector<8x16xi32>
    %cst_6 = arith.constant 0.000000e+00 : f32
    %21 = vector.broadcast %cst_6 : f32 to vector<8x16xf32>
    %22 = arith.select %20, %3, %21 : vector<8x16xi1>, vector<8x16xf32>
    %cst_7 = arith.constant dense<0.000000e+00> : vector<8xf32>
    %23 = vector.multi_reduction <add>, %22, %cst_7 [1] : vector<8x16xf32> to vector<8xf32>
    %24 = vector.shape_cast %23 : vector<8xf32> to vector<8x1xf32>
    %25 = arith.subf %24, %12 : vector<8x1xf32>
    %26 = math.log %17 : vector<8x1xf32>
    %27 = arith.subf %25, %26 : vector<8x1xf32>
    %28 = math.exp %27 : vector<8x1xf32>
    %cst_8 = arith.constant 1.000000e+00 : f32
    %29 = vector.broadcast %cst_8 : f32 to vector<8x1xf32>
    %30 = arith.subf %29, %28 : vector<8x1xf32>
    %31 = arith.mulf %30, %30 : vector<8x1xf32>
    %cst_9 = arith.constant 0.000000e+00 : f32
    %32 = vector.broadcast %cst_9 : f32 to vector<8x1xf32>
    %33 = arith.subf %32, %31 : vector<8x1xf32>
    %34 = arith.mulf %33, %27 : vector<8x1xf32>
    %c0_10 = arith.constant 0 : index
    %c0_11 = arith.constant 0 : index
    %35 = vector.load %arg4[%c0_10, %c0_11] : memref<1x1xf32, #tpu.memory_space<vmem>>, vector<1x1xf32>
    %cst_12 = arith.constant 0.000000e+00 : f32
    %36 = vector.broadcast %cst_12 : f32 to vector<8x1xf32>
    %37 = arith.select %10, %34, %36 : vector<8x1xi1>, vector<8x1xf32>
    %38 = vector.shape_cast %37 : vector<8x1xf32> to vector<1x8x1xf32>
    %cst_13 = arith.constant dense<0.000000e+00> : vector<1xf32>
    %39 = vector.multi_reduction <add>, %38, %cst_13 [1, 2] : vector<1x8x1xf32> to vector<1xf32>
    %40 = vector.shape_cast %39 : vector<1xf32> to vector<1x1x1xf32>
    %41 = vector.extract %40[0, 0, 0] : f32 from vector<1x1x1xf32>
    %42 = vector.broadcast %41 : f32 to vector<1x1xf32>
    %43 = arith.addf %35, %42 : vector<1x1xf32>
    %c0_14 = arith.constant 0 : index
    %c0_15 = arith.constant 0 : index
    %44 = vector.load %arg4[%c0_14, %c0_15] : memref<1x1xf32, #tpu.memory_space<vmem>>, vector<1x1xf32>
    tpu.vector_store %arg4[%c0_14, %c0_15], %43 {strides = array<i32>} : memref<1x1xf32, #tpu.memory_space<vmem>>, vector<1x1xf32>,
    %c0_i32_16 = arith.constant 0 : i32
    %45 = arith.cmpi eq, %arg0, %c0_i32_16 : i32
    %46 = arith.extui %45 : i1 to i32
    %c0_i32_17 = arith.constant 0 : i32
    %47 = arith.cmpi ne, %46, %c0_i32_17 : i32
    scf.if %47 {
      %c0_18 = arith.constant 0 : index
      %c0_19 = arith.constant 0 : index
      %48 = vector.load %arg4[%c0_18, %c0_19] : memref<1x1xf32, #tpu.memory_space<vmem>>, vector<1x1xf32>
      %cst_20 = arith.constant 1.250000e-01 : f32
      %49 = vector.broadcast %cst_20 : f32 to vector<1x1xf32>
      %50 = arith.mulf %48, %49 : vector<1x1xf32>
      %c0_21 = arith.constant 0 : index
      %c0_22 = arith.constant 0 : index
      %51 = vector.load %arg3[%c0_21, %c0_22] : memref<1x1xf32, #tpu.memory_space<vmem>>, vector<1x1xf32>
      tpu.vector_store %arg3[%c0_21, %c0_22], %50 {strides = array<i32>} : memref<1x1xf32, #tpu.memory_space<vmem>>, vector<1x1xf32>,
    } else {
    }
    return
  }
  func.func @transform_0(%arg0: i32) -> (i32, i32) {
    %c0_i32 = arith.constant 0 : i32
    %c0_i32_0 = arith.constant 0 : i32
    return %arg0, %c0_i32 : i32, i32
  }
  func.func @transform_1(%arg0: i32) -> (i32, i32) {
    %c0_i32 = arith.constant 0 : i32
    %c0_i32_0 = arith.constant 0 : i32
    return %arg0, %c0_i32 : i32, i32
  }
  func.func @transform_2(%arg0: i32) -> (i32, i32) {
    %c0_i32 = arith.constant 0 : i32
    %c0_i32_0 = arith.constant 0 : i32
    %c0_i32_1 = arith.constant 0 : i32
    return %c0_i32, %c0_i32_0 : i32, i32
  }
}

</mosaic_0001>

<llo_original>
// kernel: tpu_custom_call.1
$region0: #{tpu_custom_call.1}
  #allocation0 [shape = 'u32[]', space=smem, size = 0x4, offset = 0x4, fixed_abs, tag = 'smem constant byte address 0x4 - core index']
  #allocation1 [shape = 'u32[144,128]{1,0:T(1,128)}', space=vmem, size = 0x12000, scoped, tag = 'internal scratch']
  #allocation2 [shape = 'f32[1,1]{1,0:T(1,128)}', space=vmem, size = 0x200, scoped, tag = 'scratch operand']
  %s0 = inlined_call_operand.vmem [shape: f32[8,16], index: 0, kind: input, shape index: {}]
  %s1 = inlined_call_operand.vmem [shape: s32[8,1], index: 1, kind: input, shape index: {}]
  %s2 = inlined_call_operand.hbm [shape: f32[1,1], index: 2, kind: output, shape index: {}]
  %s3 = sld [smem:[#allocation0]]
  $region26: #{tpu_custom_call.1} parent=0
    _
  %s5 = ssub.s32 1, %s3
  %s6 = scalar_select 0, %s5, %s3
  $region1: #{tpu_custom_call.1} parent=0
    #allocation3 [shape = 'u8[512]{0}', space=vmem, size = 0x400, scoped, tag = 'output window, operand 0, single buffered']
    #allocation4 [shape = 's32[1]{0}', space=sflag, size = 0x4, scoped, tag = 'scoped memory for tpu_custom_call.1']
    %7 = vsyncpa [#allocation4], 0
    // Predicated region
    $region2: #{tpu_custom_call.1} parent=1 // pred_check
      _
    $region3: #{tpu_custom_call.1} parent=1 // pred_check_branch
      %9 = sbr.rel (0) target = $region5
    $region4: #{tpu_custom_call.1} parent=1 // pred_region
      _
    $region5: #{tpu_custom_call.1} parent=1 // pred_fallthru
      _
    // Predicated region
    $region6: #{tpu_custom_call.1} parent=1 // pred_check
      _
    $region7: #{tpu_custom_call.1} parent=1 // pred_check_branch
      %11 = sbr.rel (0) target = $region9
    $region8: #{tpu_custom_call.1} parent=1 // pred_region
      _
    $region9: #{tpu_custom_call.1} parent=1 // pred_fallthru
      _
    %p12 = scmp.eq.s32.totalorder 0, 0
    // Predicated region
    $region10: #{tpu_custom_call.1} parent=1 // pred_check
      %p13 = pneg %p12
    $region11: #{tpu_custom_call.1} parent=1 // pred_check_branch
      %15 = sbr.rel (%p13) target = $region13
    $region12: #{tpu_custom_call.1} parent=1 // pred_region
      %vm16 = vcmask 0
      %17 = vst.msk [vmem:[#allocation2] sm:$0x1] %vm16, 0.0
    $region13: #{tpu_custom_call.1} parent=1 // pred_fallthru
      _
    %v18 = vld [vmem:[%s0] sm:$0xff]
    %v19 = vld [vmem:[%s1] sm:$0xff]
    %v20 = vlaneseq
    %v21 = vshrl.u32 %v20, 7
    %s22 = smul.u32 0, 8
    %v23 = vstv %s22
    %v24 = vadd.s32 %v21, %v23
    %vm25 = vcmp.lt.s32.totalorder %v24, 8
    %vm26 = vcmask 130048
    %v27 = vsel %vm26, %v18, -inf
    %28 = vmax.xlane.f32.xlu0 %v27
    %v29 = vpop.xlane.xlu0 %28
    %v30 = vsub.f32 %v18, %v29
    %v31 = vmul.f32 %v30, 1.442695
    %v32 = vpow.pop %v31
    %v33 = vsel %vm26, %v32, 0.0
    %34 = vadd.xlane.f32.xlu0 %v33
    %v35 = vpop.xlane.xlu0 %34
    %v36 = vlaneseq
    %v37 = vand.u32 %v36, 127
    %38 = vset.pattern.permute.xlu0 0
    %39 = vperm.xlu0 %38, %v19
    %v40 = vpop.permute.xlu0 %39
    %vm41 = vcmp.eq.s32.totalorder %v37, %v40
    %v42 = vsel %vm41, %v18, 0.0
    %v43 = vsel %vm26, %v42, 0.0
    %44 = vadd.xlane.f32.xlu0 %v43
    %v45 = vpop.xlane.xlu0 %44
    %v46 = vsub.f32 %v45, %v29
    %v47 = vlog2.pop %v35
    %v48 = vmul.f32 %v47, 0.6931472
    %v49 = vsub.f32 %v46, %v48
    %v50 = vmul.f32 %v49, 1.442695
    %v51 = vpow.pop %v50
    %v52 = vsub.f32 1.0, %v51
    %v53 = vmul.f32 %v52, %v52
    %v54 = vsub.f32 0.0, %v53
    %v55 = vmul.f32 %v54, %v49
    %v56 = vld [vmem:[#allocation2] sm:$0x1]
    %v57 = vsel %vm25, %v55, 0.0
    %vm58 = vcmask 7168
    %v59 = vsel %vm58, %v57, 0.0
    %60 = vadd.xlane.f32.xlu0 %v59
    %v61 = vpop.xlane.xlu0 %60
    %v62 = vrot.slane %v61, 4
    %v63 = vadd.f32 %v61, %v62
    %v64 = vrot.slane %v63, 2
    %v65 = vadd.f32 %v63, %v64
    %v66 = vrot.slane %v65, 1
    %v67 = vadd.f32 %v65, %v66
    %s68 = vtos %v67
    %v69 = vstv %s68
    %v70 = vadd.f32 %v56, %v69
    %vm71 = vcmask 0
    %72 = vst.msk [vmem:[#allocation2] sm:$0x1] %vm71, %v70
    // Predicated region
    $region14: #{tpu_custom_call.1} parent=1 // pred_check
      %p73 = pneg %p12
    $region15: #{tpu_custom_call.1} parent=1 // pred_check_branch
      %75 = sbr.rel (%p73) target = $region17
    $region16: #{tpu_custom_call.1} parent=1 // pred_region
      %v76 = vld [vmem:[#allocation2] sm:$0x1]
      %v77 = vmul.f32 %v76, 0.125
      %78 = vst.msk [vmem:[#allocation3] sm:$0x1] %vm71, %v77
    $region17: #{tpu_custom_call.1} parent=1 // pred_fallthru
      _
    // Predicated region
    $region18: #{tpu_custom_call.1} parent=1 // pred_check
      _
    $region19: #{tpu_custom_call.1} parent=1 // pred_check_branch
      %80 = sbr.rel (0) target = $region21
    $region20: #{tpu_custom_call.1} parent=1 // pred_region
      %s82 = ssub.s32 16, 16
      %83 = vsyncadd [#allocation4], %s82
      %s85 = sshll.u32 [#allocation3], 4
      %s86 = int_to_ptr.vmem [resolvable:$true] %s85
      %88 = dma.vmem_to_hbm [thread:$0]  %s86, 16, %s2, [#allocation4]
    $region21: #{tpu_custom_call.1} parent=1 // pred_fallthru
      _
    // Predicated region
    $region22: #{tpu_custom_call.1} parent=1 // pred_check
      _
    $region23: #{tpu_custom_call.1} parent=1 // pred_check_branch
      %90 = sbr.rel (0) target = $region25
    $region24: #{tpu_custom_call.1} parent=1 // pred_region
      %91 = dma.done [#allocation4], 16
    $region25: #{tpu_custom_call.1} parent=1 // pred_fallthru
      _
    %92 = vsyncpa [#allocation4], 1

</llo_original>
